<compile_context>
chip_gen: v7x
topology: tpu7x:2x2x1
jax: 0.10.0
libtpu: 0.0.40
codegen_flags: <defaults>
</compile_context>

<pallas_src>
import functools

import jax
import jax.numpy as jnp
from jax import lax
from jax.experimental import pallas as pl
from jax.experimental.pallas import tpu as pltpu

EPS = 1e-6  # `EPS` is not defined in the original snippet; conventional value.

_TARGET_BLOCK_BYTES = 8 << 20          # ~8 MiB per input block
_VMEM_LIMIT_BYTES = 48 * 1024 * 1024   # 2 inputs x 2 bufs x 8 MiB = 32 MiB + headroom
_N_CORE_SPLITS = 2                     # leading parallel axis (v7x has 2 TCs)


# ---------------------------------------------------------------------------
# softmax=False: plain sums over a lane-dense 2D view of the data.
# Grid: (outer_core_split, blocks_per_core).  Outputs: per-core lane partials.
# ---------------------------------------------------------------------------
def _iou_sums_kernel(p_ref, t_ref, out_pt_ref, out_u_ref, *,
                     n_rows, tile_rows, n_blocks, blocks_per_core,
                     ragged, has_phantom):
    i = pl.program_id(1)
    g = pl.program_id(0) * blocks_per_core + i   # global block index

    @pl.when(i == 0)
    def _init():
        out_pt_ref[...] = jnp.zeros_like(out_pt_ref)
        out_u_ref[...] = jnp.zeros_like(out_u_ref)

    p = p_ref[...].astype(jnp.float32)           # (tile_rows, LANE)
    t = t_ref[...].astype(jnp.float32)

    def _accum(pv, tv):
        # Reduce over the sublane (row) axis only; lanes stay live until the
        # single cross-lane reduce in the wrapper.
        out_pt_ref[...] += jnp.sum(pv * tv, axis=0, keepdims=True)[None]
        out_u_ref[...] += jnp.sum(pv + tv, axis=0, keepdims=True)[None]

    if ragged:
        @pl.when(g < n_blocks - 1)
        def _full():
            _accum(p, t)

        @pl.when(g == n_blocks - 1)
        def _last():
            rows = g * tile_rows + lax.broadcasted_iota(jnp.int32, p.shape, 0)
            valid = rows < n_rows
            # select (not multiply) so NaN/Inf garbage rows cannot propagate.
            _accum(jnp.where(valid, p, 0.0), jnp.where(valid, t, 0.0))
    elif has_phantom:
        @pl.when(g < n_blocks)
        def _real():
            _accum(p, t)
    else:
        _accum(p, t)


# ---------------------------------------------------------------------------
# softmax=True: channel softmax on the sublane axis, spatial axis on lanes.
# Grid: (batch, hw_blocks).  Outputs: per-batch lane partials.
# ---------------------------------------------------------------------------
def _iou_softmax_kernel(x_ref, t_ref, out_pt_ref, out_t_ref, *,
                        hw, tile_hw, ragged):
    j = pl.program_id(1)
    j_last = pl.num_programs(1) - 1

    @pl.when(j == 0)
    def _init():
        out_pt_ref[...] = jnp.zeros_like(out_pt_ref)
        out_t_ref[...] = jnp.zeros_like(out_t_ref)

    x = x_ref[...].astype(jnp.float32)           # (1, C, TILE_HW)
    t = t_ref[...].astype(jnp.float32)

    def _accum(xv, tv):
        # Softmax over channels (PyTorch dim=1); no full-width normalization:
        # only the channel-reduced numerator is divided (EUP work / C) and the
        # division is kept exact to preserve accuracy.
        m = jnp.max(xv, axis=1, keepdims=True)
        e = jnp.exp(xv - m)
        denom = jnp.sum(e, axis=1, keepdims=True)           # (1, 1, TILE_HW)
        num = jnp.sum(e * tv, axis=1, keepdims=True)        # (1, 1, TILE_HW)
        out_pt_ref[...] += num / denom
        out_t_ref[...] += jnp.sum(tv, axis=1, keepdims=True)

    if ragged:
        @pl.when(j != j_last)
        def _full():
            _accum(x, t)

        @pl.when(j == j_last)
        def _last():
            cols = j * tile_hw + lax.broadcasted_iota(jnp.int32, x.shape, 2)
            valid = cols < hw
            # Mask BEFORE exp: zeroed columns give denom == C (finite) and a
            # zero numerator / zero target contribution.
            _accum(jnp.where(valid, x, 0.0), jnp.where(valid, t, 0.0))
    else:
        _accum(x, t)


# ---------------------------------------------------------------------------
# Wrapper
# ---------------------------------------------------------------------------
def iou_loss(pred, target, *, softmax=False,
             target_block_bytes=_TARGET_BLOCK_BYTES):
    """IoU loss for NCHW `pred`/`target` (matches PyTorch IOULoss.forward)."""
    assert pred.shape == target.shape
    n, c, h, w = pred.shape
    total = n * c * h * w
    itemsize = jnp.dtype(pred.dtype).itemsize

    if softmax:
        hw = h * w
        pred3 = pred.reshape(n, c, hw)            # free reshape, no transpose
        target3 = target.reshape(n, c, hw)

        # ~target_block_bytes per input block, capped so the per-batch output
        # accumulators stay small.
        cap = max(128, (target_block_bytes // (4 * c)) // 128 * 128)
        cap = min(cap, 128 * 1024)
        tile_hw = hw if hw <= cap else cap
        n_hw = pl.cdiv(hw, tile_hw)
        ragged = (hw % tile_hw) != 0

        kernel = functools.partial(_iou_softmax_kernel,
                                   hw=hw, tile_hw=tile_hw, ragged=ragged)

        out_pt, out_t = pl.pallas_call(
            kernel,
            out_shape=(jax.ShapeDtypeStruct((n, 1, tile_hw), jnp.float32),
                       jax.ShapeDtypeStruct((n, 1, tile_hw), jnp.float32)),
            grid_spec=pltpu.PrefetchScalarGridSpec(
                num_scalar_prefetch=0,
                grid=(n, n_hw),
                in_specs=[pl.BlockSpec((1, c, tile_hw), lambda b, j: (b, 0, j)),
                          pl.BlockSpec((1, c, tile_hw), lambda b, j: (b, 0, j))],
                out_specs=[pl.BlockSpec((1, 1, tile_hw), lambda b, j: (b, 0, 0)),
                           pl.BlockSpec((1, 1, tile_hw), lambda b, j: (b, 0, 0))],
            ),
            compiler_params=pltpu.CompilerParams(
                # batch axis parallel -> sharded across TCs on v7x
                dimension_semantics=("parallel", "arbitrary"),
                vmem_limit_bytes=_VMEM_LIMIT_BYTES),
            cost_estimate=pl.CostEstimate(
                flops=6 * total, transcendentals=total,
                bytes_accessed=2 * total * itemsize),
        )(pred3, target3)

        inter = jnp.sum(out_pt)
        # softmax over channels sums to 1 at every valid spatial position, so
        # sum(pred) == n*hw analytically (exact in f32 up to ~2^24 positions).
        union = jnp.float32(n * hw) + jnp.sum(out_t)
        return 1.0 - (inter + EPS) / (union - inter + EPS)

    # ----- softmax=False: sums are layout-independent -> free 2D views -----
    if total % 128 == 0:
        lane = 128                               # lane-dense flat view
    else:
        lane = w                                 # keep (full) W on lanes; no HBM pad pass
    rows = total // lane
    p2 = pred.reshape(rows, lane)
    t2 = target.reshape(rows, lane)

    max_rows = max(8, (target_block_bytes // (4 * lane)) // 8 * 8)
    tile_rows = min(rows, max_rows)
    tile_rows = ((tile_rows + 7) // 8) * 8       # keep sublane dim a multiple of 8
    n_blocks = pl.cdiv(rows, tile_rows)
    ragged = (rows % tile_rows) != 0

    n_outer = _N_CORE_SPLITS if n_blocks >= _N_CORE_SPLITS else 1
    bpc = pl.cdiv(n_blocks, n_outer)             # blocks per core
    has_phantom = n_outer * bpc > n_blocks

    if has_phantom:
        # Clamp phantom block indices in-bounds; their compute is skipped.
        def in_map(co, i):
            return (jnp.minimum(co * bpc + i, n_blocks - 1), 0)
    else:
        def in_map(co, i):
            return (co * bpc + i, 0)

    kernel = functools.partial(
        _iou_sums_kernel, n_rows=rows, tile_rows=tile_rows, n_blocks=n_blocks,
        blocks_per_core=bpc, ragged=ragged, has_phantom=has_phantom)

    out_pt, out_u = pl.pallas_call(
        kernel,
        out_shape=(jax.ShapeDtypeStruct((n_outer, 1, lane), jnp.float32),
                   jax.ShapeDtypeStruct((n_outer, 1, lane), jnp.float32)),
        grid_spec=pltpu.PrefetchScalarGridSpec(
            num_scalar_prefetch=0,
            grid=(n_outer, bpc),
            in_specs=[pl.BlockSpec((tile_rows, lane), in_map),
                      pl.BlockSpec((tile_rows, lane), in_map)],
            out_specs=[pl.BlockSpec((1, 1, lane), lambda co, i: (co, 0, 0)),
                       pl.BlockSpec((1, 1, lane), lambda co, i: (co, 0, 0))],
        ),
        compiler_params=pltpu.CompilerParams(
            # outer split parallel -> both TCs on v7x; inner is the reduction
            dimension_semantics=("parallel", "arbitrary"),
            vmem_limit_bytes=_VMEM_LIMIT_BYTES),
        cost_estimate=pl.CostEstimate(
            flops=3 * total, transcendentals=0,
            bytes_accessed=2 * total * itemsize),
    )(p2, t2)

    inter = jnp.sum(out_pt)
    union = jnp.sum(out_u)                       # = sum(pred) + sum(target)
    return 1.0 - (inter + EPS) / (union - inter + EPS)


# ---------------------------------------------------------------------------
# Reference + test
# ---------------------------------------------------------------------------
def _reference(pred, target, softmax=False):
    if softmax:
        pred = jax.nn.softmax(pred, axis=1)
    pf = pred.reshape(-1)
    tf = target.reshape(-1)
    inter = jnp.sum(pf * tf)
    union = jnp.sum(pf) + jnp.sum(tf)
    return 1.0 - (inter + EPS) / (union - inter + EPS)


def _make_inputs(key, shape):
    n, c, h, w = shape
    k1, k2 = jax.random.split(key)
    pred = jax.random.uniform(k1, shape, dtype=jnp.float32) * 2.0 - 0.5
    labels = jax.random.randint(k2, (n, h, w), 0, c)
    target = jax.nn.one_hot(labels, c, dtype=jnp.float32)
    target = jnp.transpose(target, (0, 3, 1, 2))   # NHWC -> NCHW
    return pred, target


if __name__ == "__main__":
    key = jax.random.PRNGKey(0)

    # (shape, target_block_bytes): the small block-byte overrides force the
    # multi-block / ragged / phantom / fallback-view code paths at tiny shapes.
    cases = [
        ((2, 4, 16, 16), None),     # default blocks, single block per core
        ((1, 5, 8, 128), 4096),     # odd block count -> phantom block path
        ((1, 4, 11, 128), 4096),    # ragged last row-block
        ((2, 3, 20, 20), 1536),     # total % 128 != 0 -> W-lane fallback view
    ]

    for idx, (shape, tbb) in enumerate(cases):
        key, sub = jax.random.split(key)
        pred, target = _make_inputs(sub, shape)
        kwargs = {} if tbb is None else {"target_block_bytes": tbb}
        for use_softmax in (False, True):
            out = jax.block_until_ready(
                iou_loss(pred, target, softmax=use_softmax, **kwargs))
            ref = _reference(pred, target, softmax=use_softmax)
            assert jnp.allclose(out, ref, rtol=1e-5, atol=1e-5), (
                shape, tbb, use_softmax, out, ref)

    print("KERNEL_OK")
</pallas_src>

<mosaic_0001>
module attributes {stable_mosaic.version = 11 : i64} {
  func.func @_iou_sums_kernel(%arg0: i32, %arg1: i32, %arg2: memref<16x128xf32, #tpu.memory_space<vmem>>, %arg3: memref<16x128xf32, #tpu.memory_space<vmem>>, %arg4: memref<1x1x128xf32, #tpu.memory_space<vmem>>, %arg5: memref<1x1x128xf32, #tpu.memory_space<vmem>>) attributes {dimension_semantics = [#tpu.dimension_semantics<parallel>, #tpu.dimension_semantics<arbitrary>], iteration_bounds = array<i64: 1, 1>, scalar_prefetch = 0 : i64, scratch_operands = 0 : i64, tpu.core_type = #tpu.core_type<tc>, window_params = [{transform_indices = @transform_0, window_bounds = array<i64: 16, 128>}, {transform_indices = @transform_1, window_bounds = array<i64: 16, 128>}, {transform_indices = @transform_2, window_bounds = array<i64: 1, 1, 128>}, {transform_indices = @transform_3, window_bounds = array<i64: 1, 1, 128>}]} {
    %c0_i32 = arith.constant 0 : i32
    %0 = arith.cmpi eq, %arg1, %c0_i32 : i32
    %1 = arith.extui %0 : i1 to i32
    %c0_i32_0 = arith.constant 0 : i32
    %2 = arith.cmpi ne, %1, %c0_i32_0 : i32
    scf.if %2 {
      %cst_17 = arith.constant 0.000000e+00 : f32
      %19 = vector.broadcast %cst_17 : f32 to vector<1x1x128xf32>
      %c0_18 = arith.constant 0 : index
      %c0_19 = arith.constant 0 : index
      %c0_20 = arith.constant 0 : index
      %20 = vector.load %arg4[%c0_18, %c0_19, %c0_20] : memref<1x1x128xf32, #tpu.memory_space<vmem>>, vector<1x1x128xf32>
      tpu.vector_store %arg4[%c0_18, %c0_19, %c0_20], %19 {strides = array<i32>} : memref<1x1x128xf32, #tpu.memory_space<vmem>>, vector<1x1x128xf32>,
      %cst_21 = arith.constant 0.000000e+00 : f32
      %21 = vector.broadcast %cst_21 : f32 to vector<1x1x128xf32>
      %c0_22 = arith.constant 0 : index
      %c0_23 = arith.constant 0 : index
      %c0_24 = arith.constant 0 : index
      %22 = vector.load %arg5[%c0_22, %c0_23, %c0_24] : memref<1x1x128xf32, #tpu.memory_space<vmem>>, vector<1x1x128xf32>
      tpu.vector_store %arg5[%c0_22, %c0_23, %c0_24], %21 {strides = array<i32>} : memref<1x1x128xf32, #tpu.memory_space<vmem>>, vector<1x1x128xf32>,
    } else {
    }
    %c0 = arith.constant 0 : index
    %c0_1 = arith.constant 0 : index
    %3 = vector.load %arg2[%c0, %c0_1] : memref<16x128xf32, #tpu.memory_space<vmem>>, vector<16x128xf32>
    %c0_2 = arith.constant 0 : index
    %c0_3 = arith.constant 0 : index
    %4 = vector.load %arg3[%c0_2, %c0_3] : memref<16x128xf32, #tpu.memory_space<vmem>>, vector<16x128xf32>
    %c0_4 = arith.constant 0 : index
    %c0_5 = arith.constant 0 : index
    %c0_6 = arith.constant 0 : index
    %5 = vector.load %arg4[%c0_4, %c0_5, %c0_6] : memref<1x1x128xf32, #tpu.memory_space<vmem>>, vector<1x1x128xf32>
    %6 = arith.mulf %3, %4 : vector<16x128xf32>
    %cst = arith.constant dense<0.000000e+00> : vector<128xf32>
    %7 = vector.multi_reduction <add>, %6, %cst [0] : vector<16x128xf32> to vector<128xf32>
    %8 = vector.shape_cast %7 : vector<128xf32> to vector<1x128xf32>
    %9 = vector.shape_cast %8 : vector<1x128xf32> to vector<1x1x128xf32>
    %10 = arith.addf %5, %9 : vector<1x1x128xf32>
    %c0_7 = arith.constant 0 : index
    %c0_8 = arith.constant 0 : index
    %c0_9 = arith.constant 0 : index
    %11 = vector.load %arg4[%c0_7, %c0_8, %c0_9] : memref<1x1x128xf32, #tpu.memory_space<vmem>>, vector<1x1x128xf32>
    tpu.vector_store %arg4[%c0_7, %c0_8, %c0_9], %10 {strides = array<i32>} : memref<1x1x128xf32, #tpu.memory_space<vmem>>, vector<1x1x128xf32>,
    %c0_10 = arith.constant 0 : index
    %c0_11 = arith.constant 0 : index
    %c0_12 = arith.constant 0 : index
    %12 = vector.load %arg5[%c0_10, %c0_11, %c0_12] : memref<1x1x128xf32, #tpu.memory_space<vmem>>, vector<1x1x128xf32>
    %13 = arith.addf %3, %4 : vector<16x128xf32>
    %cst_13 = arith.constant dense<0.000000e+00> : vector<128xf32>
    %14 = vector.multi_reduction <add>, %13, %cst_13 [0] : vector<16x128xf32> to vector<128xf32>
    %15 = vector.shape_cast %14 : vector<128xf32> to vector<1x128xf32>
    %16 = vector.shape_cast %15 : vector<1x128xf32> to vector<1x1x128xf32>
    %17 = arith.addf %12, %16 : vector<1x1x128xf32>
    %c0_14 = arith.constant 0 : index
    %c0_15 = arith.constant 0 : index
    %c0_16 = arith.constant 0 : index
    %18 = vector.load %arg5[%c0_14, %c0_15, %c0_16] : memref<1x1x128xf32, #tpu.memory_space<vmem>>, vector<1x1x128xf32>
    tpu.vector_store %arg5[%c0_14, %c0_15, %c0_16], %17 {strides = array<i32>} : memref<1x1x128xf32, #tpu.memory_space<vmem>>, vector<1x1x128xf32>,
    return
  }
  func.func @transform_0(%arg0: i32, %arg1: i32) -> (i32, i32) {
    %c1_i32 = arith.constant 1 : i32
    %0 = arith.muli %arg0, %c1_i32 : i32
    %1 = arith.addi %0, %arg1 : i32
    %c0_i32 = arith.constant 0 : i32
    %c0_i32_0 = arith.constant 0 : i32
    return %1, %c0_i32 : i32, i32
  }
  func.func @transform_1(%arg0: i32, %arg1: i32) -> (i32, i32) {
    %c1_i32 = arith.constant 1 : i32
    %0 = arith.muli %arg0, %c1_i32 : i32
    %1 = arith.addi %0, %arg1 : i32
    %c0_i32 = arith.constant 0 : i32
    %c0_i32_0 = arith.constant 0 : i32
    return %1, %c0_i32 : i32, i32
  }
  func.func @transform_2(%arg0: i32, %arg1: i32) -> (i32, i32, i32) {
    %c0_i32 = arith.constant 0 : i32
    %c0_i32_0 = arith.constant 0 : i32
    %c0_i32_1 = arith.constant 0 : i32
    return %arg0, %c0_i32, %c0_i32_0 : i32, i32, i32
  }
  func.func @transform_3(%arg0: i32, %arg1: i32) -> (i32, i32, i32) {
    %c0_i32 = arith.constant 0 : i32
    %c0_i32_0 = arith.constant 0 : i32
    %c0_i32_1 = arith.constant 0 : i32
    return %arg0, %c0_i32, %c0_i32_0 : i32, i32, i32
  }
}

</mosaic_0001>

<llo_original>
// kernel: tpu_custom_call.1
$region0: #{tpu_custom_call.1}
  #allocation0 [shape = 'u32[]', space=smem, size = 0x4, offset = 0x4, fixed_abs, tag = 'smem constant byte address 0x4 - core index']
  #allocation1 [shape = 'u32[144,128]{1,0:T(1,128)}', space=vmem, size = 0x12000, scoped, tag = 'internal scratch']
  %s0 = inlined_call_operand.hbm [shape: f32[16,128], index: 0, kind: input, shape index: {}]
  %s1 = inlined_call_operand.hbm [shape: f32[16,128], index: 1, kind: input, shape index: {}]
  %s2 = inlined_call_operand.hbm [shape: f32[1,1,128], index: 2, kind: output, shape index: {0}]
  %s3 = inlined_call_operand.hbm [shape: f32[1,1,128], index: 3, kind: output, shape index: {1}]
  %4 = xla_tuple %s2, %s3
  %s5 = sld [smem:[#allocation0]]
  $region38: #{tpu_custom_call.1} parent=0
    _
  %s7 = ssub.s32 1, %s5
  %s8 = scalar_select 0, %s7, %s5
  $region1: #{tpu_custom_call.1} parent=0
    #allocation2 [shape = 'u8[8192]{0}', space=vmem, size = 0x2000, scoped, tag = 'input window, operand 0, single buffered']
    #allocation3 [shape = 's32[1]{0}', space=sflag, size = 0x4, scoped, tag = 'scoped memory for tpu_custom_call.1']
    #allocation4 [shape = 's32[1]{0}', space=sflag, size = 0x4, scoped, tag = 'scoped memory for tpu_custom_call.1']
    #allocation5 [shape = 'u8[8192]{0}', space=vmem, size = 0x2000, scoped, tag = 'input window, operand 1, single buffered']
    #allocation6 [shape = 's32[1]{0}', space=sflag, size = 0x4, scoped, tag = 'scoped memory for tpu_custom_call.1']
    #allocation7 [shape = 'u8[512]{0}', space=vmem, size = 0x400, scoped, tag = 'output window, operand 0, single buffered']
    #allocation8 [shape = 'u8[512]{0}', space=vmem, size = 0x400, scoped, tag = 'output window, operand 1, single buffered']
    #allocation9 [shape = 's32[1]{0}', space=sflag, size = 0x4, scoped, tag = 'scoped memory for tpu_custom_call.1']
    %9 = vsyncpa [#allocation3], 0
    %10 = vsyncpa [#allocation6], 0
    %11 = vsyncpa [#allocation4], 0
    %12 = vsyncpa [#allocation9], 0
    // Predicated region
    $region2: #{tpu_custom_call.1} parent=1 // pred_check
      _
    $region3: #{tpu_custom_call.1} parent=1 // pred_check_branch
      %14 = sbr.rel (0) target = $region5
    $region4: #{tpu_custom_call.1} parent=1 // pred_region
      %s15 = sadd.s32 0, 0
      %s16 = smul.u32 2, %s15
      %s18 = ssub.s32 256, 256
      %19 = vsyncadd [#allocation3], %s18
      %s20 = smul.addr %s16, 128
      %s21 = scalar_lea.hbm %s0, %s20
      %s22 = sshll.u32 [#allocation2], 4
      %s23 = int_to_ptr.vmem [resolvable:$true] %s22
      %28 = dma.hbm_to_vmem [thread:$0]  %s21, 256, %s23, [#allocation3], 128, 128, 8
    $region5: #{tpu_custom_call.1} parent=1 // pred_fallthru
      _
    // Predicated region
    $region6: #{tpu_custom_call.1} parent=1 // pred_check
      _
    $region7: #{tpu_custom_call.1} parent=1 // pred_check_branch
      %30 = sbr.rel (0) target = $region9
    $region8: #{tpu_custom_call.1} parent=1 // pred_region
      %s31 = sadd.s32 0, 0
      %s32 = smul.u32 2, %s31
      %s34 = ssub.s32 256, 256
      %35 = vsyncadd [#allocation6], %s34
      %s36 = smul.addr %s32, 128
      %s37 = scalar_lea.hbm %s1, %s36
      %s38 = sshll.u32 [#allocation5], 4
      %s39 = int_to_ptr.vmem [resolvable:$true] %s38
      %44 = dma.hbm_to_vmem [thread:$0]  %s37, 256, %s39, [#allocation6], 128, 128, 8
    $region9: #{tpu_custom_call.1} parent=1 // pred_fallthru
      _
    // Predicated region
    $region10: #{tpu_custom_call.1} parent=1 // pred_check
      _
    $region11: #{tpu_custom_call.1} parent=1 // pred_check_branch
      %46 = sbr.rel (0) target = $region13
    $region12: #{tpu_custom_call.1} parent=1 // pred_region
      %47 = dma.done [#allocation3], 256
    $region13: #{tpu_custom_call.1} parent=1 // pred_fallthru
      _
    // Predicated region
    $region14: #{tpu_custom_call.1} parent=1 // pred_check
      _
    $region15: #{tpu_custom_call.1} parent=1 // pred_check_branch
      %49 = sbr.rel (0) target = $region17
    $region16: #{tpu_custom_call.1} parent=1 // pred_region
      %50 = dma.done [#allocation6], 256
    $region17: #{tpu_custom_call.1} parent=1 // pred_fallthru
      _
    %s51 = sadd.s32 0, 0
    %s52 = smul.u32 2, %s51
    %s53 = sadd.s32 0, 0
    %s54 = smul.u32 2, %s53
    %p55 = scmp.eq.s32.totalorder 0, 0
    // Predicated region
    $region18: #{tpu_custom_call.1} parent=1 // pred_check
      %p56 = pneg %p55
    $region19: #{tpu_custom_call.1} parent=1 // pred_check_branch
      %58 = sbr.rel (%p56) target = $region21
    $region20: #{tpu_custom_call.1} parent=1 // pred_region
      %59 = vst [vmem:[#allocation7] sm:$0x1] 0.0
      %60 = vst [vmem:[#allocation8] sm:$0x1] 0.0
    $region21: #{tpu_custom_call.1} parent=1 // pred_fallthru
      _
    %v61 = vld [vmem:[#allocation2] sm:$0xff]
    %v62 = vld [vmem:[#allocation2 + $0x8] sm:$0xff]
    %v63 = vld [vmem:[#allocation5] sm:$0xff]
    %v64 = vld [vmem:[#allocation5 + $0x8] sm:$0xff]
    %v65 = vld [vmem:[#allocation7] sm:$0x1]
    %v66 = vmul.f32 %v61, %v63
    %v67 = vmul.f32 %v62, %v64
    %v68 = vadd.f32 %v66, %v67
    %v69 = vrot.slane %v68, 4
    %v70 = vadd.f32 %v68, %v69
    %v71 = vrot.slane %v70, 2
    %v72 = vadd.f32 %v70, %v71
    %v73 = vrot.slane %v72, 1
    %v74 = vadd.f32 %v72, %v73
    %v75 = vadd.f32 %v65, %v74
    %76 = vst [vmem:[#allocation7] sm:$0x1] %v75
    %v77 = vld [vmem:[#allocation8] sm:$0x1]
    %v78 = vadd.f32 %v61, %v63
    %v79 = vadd.f32 %v62, %v64
    %v80 = vadd.f32 %v78, %v79
    %v81 = vrot.slane %v80, 4
    %v82 = vadd.f32 %v80, %v81
    %v83 = vrot.slane %v82, 2
    %v84 = vadd.f32 %v82, %v83
    %v85 = vrot.slane %v84, 1
    %v86 = vadd.f32 %v84, %v85
    %v87 = vadd.f32 %v77, %v86
    %88 = vst [vmem:[#allocation8] sm:$0x1] %v87
    // Predicated region
    $region22: #{tpu_custom_call.1} parent=1 // pred_check
      _
    $region23: #{tpu_custom_call.1} parent=1 // pred_check_branch
      %90 = sbr.rel (0) target = $region25
    $region24: #{tpu_custom_call.1} parent=1 // pred_region
      %s92 = ssub.s32 16, 16
      %93 = vsyncadd [#allocation4], %s92
      %s95 = sshll.u32 [#allocation7], 4
      %s96 = int_to_ptr.vmem [resolvable:$true] %s95
      %98 = dma.vmem_to_hbm [thread:$0]  %s96, 16, %s2, [#allocation4]
    $region25: #{tpu_custom_call.1} parent=1 // pred_fallthru
      _
    // Predicated region
    $region26: #{tpu_custom_call.1} parent=1 // pred_check
      _
    $region27: #{tpu_custom_call.1} parent=1 // pred_check_branch
      %100 = sbr.rel (0) target = $region29
    $region28: #{tpu_custom_call.1} parent=1 // pred_region
      %s102 = ssub.s32 16, 16
      %103 = vsyncadd [#allocation9], %s102
      %s105 = sshll.u32 [#allocation8], 4
      %s106 = int_to_ptr.vmem [resolvable:$true] %s105
      %108 = dma.vmem_to_hbm [thread:$0]  %s106, 16, %s3, [#allocation9]
    $region29: #{tpu_custom_call.1} parent=1 // pred_fallthru
      _
    // Predicated region
    $region30: #{tpu_custom_call.1} parent=1 // pred_check
      _
    $region31: #{tpu_custom_call.1} parent=1 // pred_check_branch
      %110 = sbr.rel (0) target = $region33
    $region32: #{tpu_custom_call.1} parent=1 // pred_region
      %111 = dma.done [#allocation4], 16
    $region33: #{tpu_custom_call.1} parent=1 // pred_fallthru
      _
    // Predicated region
    $region34: #{tpu_custom_call.1} parent=1 // pred_check
      _
    $region35: #{tpu_custom_call.1} parent=1 // pred_check_branch
      %113 = sbr.rel (0) target = $region37
    $region36: #{tpu_custom_call.1} parent=1 // pred_region
      %114 = dma.done [#allocation9], 16
    $region37: #{tpu_custom_call.1} parent=1 // pred_fallthru
      _
    %115 = vsyncpa [#allocation3], 1
    %116 = vsyncpa [#allocation6], 1
    %117 = vsyncpa [#allocation4], 1
    %118 = vsyncpa [#allocation9], 1

</llo_original>
